<compile_context>
chip_gen: v5e
topology: v5e:2x2
jax: 0.10.0
libtpu: 0.0.40
codegen_flags: <defaults>
</compile_context>

<pallas_src>
import functools

import jax
import jax.numpy as jnp
import numpy as np
from jax.experimental import pallas as pl
from jax.experimental.pallas import tpu as pltpu

EPS = 1e-5   # LayerNorm eps
LANE = 128
SUB = 8


def _round_up(x, m):
    return (x + m - 1) // m * m


def _chip_defaults():
    """Per-generation (token_tile, scoped VMEM limit)."""
    try:
        info = pltpu.get_tpu_info()
        cap = getattr(info, "vmem_capacity_bytes", None)
    except Exception:  # pragma: no cover - info not available
        cap = None
    if cap is None:
        return 1024, 48 * 1024 * 1024          # unknown chip: stay safe
    if cap >= 100 * 1024 * 1024:
        return 1024, 96 * 1024 * 1024          # v5e / v6e: 128 MiB physical VMEM
    return 512, 48 * 1024 * 1024               # v7x-class: 64 MiB per TensorCore


def _binding_affinity_kernel(
    s_ref,              # [1, T, CP] bf16  token tile of one batch element
    ln_w_ref, ln_b_ref,  # [1, CP]  f32
    w1_ref, b1_ref,      # [CP, CP] bf16, [1, CP]  f32   affinity_in Linear 1
    w2_ref, b2_ref,      # [CP, CP] bf16, [1, CP]  f32   affinity_in Linear 2
    h1w_ref, h1b_ref,    # [CP, CP] bf16, [1, CP]  f32   head Linear 1
    h2w_ref, h2b_ref,    # [CP, CHP] bf16, [1, CHP] f32  head Linear 2
    h3w_ref, h3b_ref,    # [CHP, OUTP] bf16, [1, OUTP]   head Linear 3
    out_ref,             # [1, 1, OUTP] f32
    sum_h,               # VMEM scratch [1, CP] f32  per-batch sum of h
    cnt,                 # VMEM scratch [1, CP] f32  per-batch mask count
    *, c_real, s_real, tile_t, needs_row_mask,
):
    j = pl.program_id(1)
    last = pl.num_programs(1) - 1

    @pl.when(j == 0)
    def _():
        sum_h[...] = jnp.zeros_like(sum_h)
        cnt[...] = jnp.zeros_like(cnt)

    s = s_ref[0].astype(jnp.float32)                    # [T, CP]

    # mask = ones_like(s); mask[s == 0] = 0  (per-element, reduced over tokens)
    mask = jnp.where(s != 0.0, 1.0, 0.0)
    cnt[...] += jnp.sum(mask, axis=0, keepdims=True)

    # LayerNorm over the REAL channel count, single fused stats pass.
    # Padded lanes of s / gamma / beta are zero, so no channel mask is needed.
    inv_c = 1.0 / float(c_real)
    mu = jnp.sum(s, axis=-1, keepdims=True) * inv_c
    ex2 = jnp.sum(s * s, axis=-1, keepdims=True) * inv_c
    var = ex2 - mu * mu
    s_n = (s - mu) * jax.lax.rsqrt(var + EPS) * ln_w_ref[...] + ln_b_ref[...]

    # affinity_in: Linear -> SiLU -> Linear  (bf16 MXU inputs, f32 accumulate)
    h = jnp.dot(s_n.astype(jnp.bfloat16), w1_ref[...],
                preferred_element_type=jnp.float32) + b1_ref[...]
    h = h * jax.nn.sigmoid(h)                           # SiLU in f32 (v5e-safe)
    h = jnp.dot(h.astype(jnp.bfloat16), w2_ref[...],
                preferred_element_type=jnp.float32) + b2_ref[...]

    if needs_row_mask:
        # Zero contributions from artificially padded token rows.
        row = jax.lax.broadcasted_iota(jnp.int32, (h.shape[0], 1), 0) + j * tile_t
        h = h * (row < s_real).astype(jnp.float32)

    sum_h[...] += jnp.sum(h, axis=0, keepdims=True)     # true-f32 token sum

    @pl.when(j == last)
    def _():
        # Exact division (epilogue runs once per batch; no approx reciprocal).
        # Real channels with zero mask count give inf/NaN like the reference;
        # only artificially padded lanes (0/0) are guarded out.
        denom = cnt[...]
        lane = jax.lax.broadcasted_iota(jnp.int32, denom.shape, 1)
        s_aff = jnp.where(lane < c_real, sum_h[...] / denom, 0.0)

        # binding_affinity_head: Linear -> ReLU -> Linear -> ReLU -> Linear(->1)
        y = jnp.dot(s_aff.astype(jnp.bfloat16), h1w_ref[...],
                    preferred_element_type=jnp.float32) + h1b_ref[...]
        y = jnp.maximum(y, 0.0)
        y = jnp.dot(y.astype(jnp.bfloat16), h2w_ref[...],
                    preferred_element_type=jnp.float32) + h2b_ref[...]
        y = jnp.maximum(y, 0.0)
        y = jnp.dot(y.astype(jnp.bfloat16), h3w_ref[...],
                    preferred_element_type=jnp.float32) + h3b_ref[...]
        out_ref[...] = y.reshape(out_ref.shape)         # lane-dense; col 0 is real


def binding_affinity_predictor(s, params, *, token_tile=None):
    """Wrapper: pick per-chip tiling, pad only when needed, run the kernel."""
    f32, bf16 = jnp.float32, jnp.bfloat16
    B, S, C = s.shape
    Ch = C // 2
    CP = C if C % LANE == 0 else _round_up(C, LANE)
    CHP = Ch if Ch % LANE == 0 else _round_up(Ch, LANE)
    OUTP = LANE                                  # lane-dense head output, slice later

    default_tile, vmem_limit = _chip_defaults()
    if token_tile is None:
        token_tile = default_tile

    if S <= token_tile:
        T, SP = S, S                             # whole sequence in one tile, no pad
    else:
        T = _round_up(token_tile, SUB)
        SP = _round_up(S, T)
    n_j = SP // T
    needs_row_mask = SP != S

    # bf16 activations (halves the dominant HBM stream); pad only when needed.
    # TODO(synk): in production, have the upstream producer emit s already in
    # bf16 with c_s a multiple of 128 so this cast/pad fuses away entirely.
    if CP == C and SP == S:
        s3 = s.astype(bf16)
    else:
        s3 = jnp.pad(s.astype(bf16), ((0, 0), (0, SP - S), (0, CP - C)))

    def pad_row(v, width):
        v = jnp.asarray(v, f32).reshape(1, -1)
        return jnp.pad(v, ((0, 0), (0, width - v.shape[-1])))

    def pad_mat(w, rows, cols):                  # w is [in, out] f32 -> padded bf16
        w = jnp.asarray(w, f32)
        return jnp.pad(w, ((0, rows - w.shape[0]), (0, cols - w.shape[1]))).astype(bf16)

    args = (
        s3,
        pad_row(params["ln_w"], CP), pad_row(params["ln_b"], CP),
        pad_mat(params["w1"].T, CP, CP), pad_row(params["b1"], CP),
        pad_mat(params["w2"].T, CP, CP), pad_row(params["b2"], CP),
        pad_mat(params["h1w"].T, CP, CP), pad_row(params["h1b"], CP),
        pad_mat(params["h2w"].T, CP, CHP), pad_row(params["h2b"], CHP),
        pad_mat(params["h3w"].T, CHP, OUTP), pad_row(params["h3b"], OUTP),
    )

    # Weights/biases use constant index maps so they stay resident across the grid.
    # TODO(synk): at production c_s (512-1024) mark these specs with
    # pipeline_mode=pl.Buffered(1) to reclaim the redundant double-buffer copy
    # inside v7x's 64 MiB VMEM budget.
    rep = lambda b, j: (0, 0)
    in_specs = [
        pl.BlockSpec((1, T, CP), lambda b, j: (b, j, 0)),   # token tile of batch b
        pl.BlockSpec((1, CP), rep), pl.BlockSpec((1, CP), rep),
        pl.BlockSpec((CP, CP), rep), pl.BlockSpec((1, CP), rep),
        pl.BlockSpec((CP, CP), rep), pl.BlockSpec((1, CP), rep),
        pl.BlockSpec((CP, CP), rep), pl.BlockSpec((1, CP), rep),
        pl.BlockSpec((CP, CHP), rep), pl.BlockSpec((1, CHP), rep),
        pl.BlockSpec((CHP, OUTP), rep), pl.BlockSpec((1, OUTP), rep),
    ]

    kernel = functools.partial(
        _binding_affinity_kernel,
        c_real=C, s_real=S, tile_t=T, needs_row_mask=needs_row_mask)

    out_padded = pl.pallas_call(
        kernel,
        out_shape=jax.ShapeDtypeStruct((B, 1, OUTP), f32),
        grid_spec=pltpu.PrefetchScalarGridSpec(
            num_scalar_prefetch=0,
            grid=(B, n_j),                               # batch-parallel x seq-reduction
            in_specs=in_specs,
            out_specs=pl.BlockSpec((1, 1, OUTP), lambda b, j: (b, 0, 0)),
            scratch_shapes=[pltpu.VMEM((1, CP), f32),    # per-batch sum(h)
                            pltpu.VMEM((1, CP), f32)],   # per-batch mask count
        ),
        compiler_params=pltpu.CompilerParams(
            dimension_semantics=("parallel", "arbitrary"),  # v7x: batch across both TCs
            vmem_limit_bytes=vmem_limit,
        ),
    )(*args)
    return out_padded[:, 0, :1]


def init_params(key, c_s):
    """Deterministic synthetic parameters (PyTorch shapes: W is [out, in])."""
    ks = jax.random.split(key, 12)

    def lin(kw, kb, out_f, in_f, scale=None):
        scale = scale if scale is not None else 1.0 / np.sqrt(in_f)
        w = jax.random.normal(kw, (out_f, in_f), jnp.float32) * scale
        b = jax.random.normal(kb, (out_f,), jnp.float32) * 0.01
        return w, b

    p = {}
    p["ln_w"] = jnp.ones((c_s,), jnp.float32)
    p["ln_b"] = jnp.zeros((c_s,), jnp.float32)
    p["w1"], p["b1"] = lin(ks[0], ks[1], c_s, c_s)
    p["w2"], p["b2"] = lin(ks[2], ks[3], c_s, c_s)
    p["h1w"], p["h1b"] = lin(ks[4], ks[5], c_s, c_s)
    p["h2w"], p["h2b"] = lin(ks[6], ks[7], c_s // 2, c_s)
    # last Linear has init='final' (zero) in the reference; keep small non-zero
    # here so the output exercises the full path deterministically.
    p["h3w"], p["h3b"] = lin(ks[8], ks[9], 1, c_s // 2, scale=0.1)
    return p


def reference_forward(s, params):
    """Pure-JAX reference mirroring the kernel numerics (bf16 input/MXU, f32 accum)."""
    f32, bf16 = jnp.float32, jnp.bfloat16

    def mm(x, w_t):
        return jnp.dot(x.astype(bf16), w_t.astype(bf16), preferred_element_type=f32)

    x = s.astype(bf16).astype(f32)          # kernel consumes bf16 activations
    mask = (x != 0.0).astype(f32)
    mu = jnp.mean(x, axis=-1, keepdims=True)
    var = jnp.mean(jnp.square(x - mu), axis=-1, keepdims=True)
    sn = (x - mu) * jax.lax.rsqrt(var + EPS) * params["ln_w"] + params["ln_b"]
    h = mm(sn, params["w1"].T) + params["b1"]
    h = h * jax.nn.sigmoid(h)
    h = mm(h, params["w2"].T) + params["b2"]
    s_aff = jnp.sum(h, axis=-2) / jnp.sum(mask, axis=-2)
    y = jnp.maximum(mm(s_aff, params["h1w"].T) + params["h1b"], 0.0)
    y = jnp.maximum(mm(y, params["h2w"].T) + params["h2b"], 0.0)
    y = mm(y, params["h3w"].T) + params["h3b"]
    return y


if __name__ == "__main__":
    B, S, C = 2, 8, 64  # batch, sequence length, c_s
    key = jax.random.PRNGKey(0)
    k_s, k_p = jax.random.split(key)

    s = jax.random.normal(k_s, (B, S, C), jnp.float32)
    params = init_params(k_p, C)

    out = jax.block_until_ready(binding_affinity_predictor(s, params))
    ref = reference_forward(s, params)

    assert out.shape == (B, 1)
    assert np.all(np.isfinite(np.asarray(out)))
    # Tolerance accounts for bf16 activations/weights on the MXU path.
    np.testing.assert_allclose(np.asarray(out), np.asarray(ref), rtol=1e-2, atol=1e-2)

    print("KERNEL_OK")
</pallas_src>

<mosaic_0001>
module attributes {stable_mosaic.version = 11 : i64} {
  func.func @_binding_affinity_kernel(%arg0: i32, %arg1: i32, %arg2: memref<1x8x128xbf16, #tpu.memory_space<vmem>>, %arg3: memref<1x128xf32, #tpu.memory_space<vmem>>, %arg4: memref<1x128xf32, #tpu.memory_space<vmem>>, %arg5: memref<128x128xbf16, #tpu.memory_space<vmem>>, %arg6: memref<1x128xf32, #tpu.memory_space<vmem>>, %arg7: memref<128x128xbf16, #tpu.memory_space<vmem>>, %arg8: memref<1x128xf32, #tpu.memory_space<vmem>>, %arg9: memref<128x128xbf16, #tpu.memory_space<vmem>>, %arg10: memref<1x128xf32, #tpu.memory_space<vmem>>, %arg11: memref<128x128xbf16, #tpu.memory_space<vmem>>, %arg12: memref<1x128xf32, #tpu.memory_space<vmem>>, %arg13: memref<128x128xbf16, #tpu.memory_space<vmem>>, %arg14: memref<1x128xf32, #tpu.memory_space<vmem>>, %arg15: memref<1x1x128xf32, #tpu.memory_space<vmem>>, %arg16: memref<1x128xf32, #tpu.memory_space<vmem>>, %arg17: memref<1x128xf32, #tpu.memory_space<vmem>>) attributes {dimension_semantics = [#tpu.dimension_semantics<parallel>, #tpu.dimension_semantics<arbitrary>], iteration_bounds = array<i64: 2, 1>, scalar_prefetch = 0 : i64, scratch_operands = 2 : i64, tpu.core_type = #tpu.core_type<tc>, window_params = [{transform_indices = @transform_0, window_bounds = array<i64: 1, 8, 128>}, {pipeline_mode = #tpu.pipeline_mode<synchronous>, transform_indices = @transform_1, window_bounds = array<i64: 1, 128>}, {pipeline_mode = #tpu.pipeline_mode<synchronous>, transform_indices = @transform_2, window_bounds = array<i64: 1, 128>}, {pipeline_mode = #tpu.pipeline_mode<synchronous>, transform_indices = @transform_3, window_bounds = array<i64: 128, 128>}, {pipeline_mode = #tpu.pipeline_mode<synchronous>, transform_indices = @transform_4, window_bounds = array<i64: 1, 128>}, {pipeline_mode = #tpu.pipeline_mode<synchronous>, transform_indices = @transform_5, window_bounds = array<i64: 128, 128>}, {pipeline_mode = #tpu.pipeline_mode<synchronous>, transform_indices = @transform_6, window_bounds = array<i64: 1, 128>}, {pipeline_mode = #tpu.pipeline_mode<synchronous>, transform_indices = @transform_7, window_bounds = array<i64: 128, 128>}, {pipeline_mode = #tpu.pipeline_mode<synchronous>, transform_indices = @transform_8, window_bounds = array<i64: 1, 128>}, {pipeline_mode = #tpu.pipeline_mode<synchronous>, transform_indices = @transform_9, window_bounds = array<i64: 128, 128>}, {pipeline_mode = #tpu.pipeline_mode<synchronous>, transform_indices = @transform_10, window_bounds = array<i64: 1, 128>}, {pipeline_mode = #tpu.pipeline_mode<synchronous>, transform_indices = @transform_11, window_bounds = array<i64: 128, 128>}, {pipeline_mode = #tpu.pipeline_mode<synchronous>, transform_indices = @transform_12, window_bounds = array<i64: 1, 128>}, {transform_indices = @transform_13, window_bounds = array<i64: 1, 1, 128>}]} {
    %c0_i32 = arith.constant 0 : i32
    %0 = arith.cmpi eq, %arg1, %c0_i32 : i32
    %1 = arith.extui %0 : i1 to i32
    %c0_i32_0 = arith.constant 0 : i32
    %2 = arith.cmpi ne, %1, %c0_i32_0 : i32
    scf.if %2 {
      %cst_37 = arith.constant 0.000000e+00 : f32
      %66 = vector.broadcast %cst_37 : f32 to vector<1x128xf32>
      %c0_38 = arith.constant 0 : index
      %c0_39 = arith.constant 0 : index
      %67 = vector.load %arg16[%c0_38, %c0_39] : memref<1x128xf32, #tpu.memory_space<vmem>>, vector<1x128xf32>
      tpu.vector_store %arg16[%c0_38, %c0_39], %66 {strides = array<i32>} : memref<1x128xf32, #tpu.memory_space<vmem>>, vector<1x128xf32>,
      %cst_40 = arith.constant 0.000000e+00 : f32
      %68 = vector.broadcast %cst_40 : f32 to vector<1x128xf32>
      %c0_41 = arith.constant 0 : index
      %c0_42 = arith.constant 0 : index
      %69 = vector.load %arg17[%c0_41, %c0_42] : memref<1x128xf32, #tpu.memory_space<vmem>>, vector<1x128xf32>
      tpu.vector_store %arg17[%c0_41, %c0_42], %68 {strides = array<i32>} : memref<1x128xf32, #tpu.memory_space<vmem>>, vector<1x128xf32>,
    } else {
    }
    %c0 = arith.constant 0 : index
    %c0_1 = arith.constant 0 : index
    %c0_2 = arith.constant 0 : index
    %3 = vector.load %arg2[%c0, %c0_1, %c0_2] : memref<1x8x128xbf16, #tpu.memory_space<vmem>>, vector<1x8x128xbf16>
    %4 = vector.shape_cast %3 : vector<1x8x128xbf16> to vector<8x128xbf16>
    %5 = arith.extf %4 : vector<8x128xbf16> to vector<8x128xf32>
    %cst = arith.constant 0.000000e+00 : f32
    %6 = vector.broadcast %cst : f32 to vector<8x128xf32>
    %7 = arith.cmpf one, %5, %6 : vector<8x128xf32>
    %cst_3 = arith.constant 1.000000e+00 : f32
    %cst_4 = arith.constant 0.000000e+00 : f32
    %8 = vector.broadcast %cst_3 : f32 to vector<8x128xf32>
    %9 = vector.broadcast %cst_4 : f32 to vector<8x128xf32>
    %10 = arith.select %7, %8, %9 : vector<8x128xi1>, vector<8x128xf32>
    %c0_5 = arith.constant 0 : index
    %c0_6 = arith.constant 0 : index
    %11 = vector.load %arg17[%c0_5, %c0_6] : memref<1x128xf32, #tpu.memory_space<vmem>>, vector<1x128xf32>
    %cst_7 = arith.constant dense<0.000000e+00> : vector<128xf32>
    %12 = vector.multi_reduction <add>, %10, %cst_7 [0] : vector<8x128xf32> to vector<128xf32>
    %13 = vector.shape_cast %12 : vector<128xf32> to vector<1x128xf32>
    %14 = arith.addf %11, %13 : vector<1x128xf32>
    %c0_8 = arith.constant 0 : index
    %c0_9 = arith.constant 0 : index
    %15 = vector.load %arg17[%c0_8, %c0_9] : memref<1x128xf32, #tpu.memory_space<vmem>>, vector<1x128xf32>
    tpu.vector_store %arg17[%c0_8, %c0_9], %14 {strides = array<i32>} : memref<1x128xf32, #tpu.memory_space<vmem>>, vector<1x128xf32>,
    %cst_10 = arith.constant dense<0.000000e+00> : vector<8xf32>
    %16 = vector.multi_reduction <add>, %5, %cst_10 [1] : vector<8x128xf32> to vector<8xf32>
    %17 = vector.shape_cast %16 : vector<8xf32> to vector<8x1xf32>
    %cst_11 = arith.constant 1.562500e-02 : f32
    %18 = vector.broadcast %cst_11 : f32 to vector<8x1xf32>
    %19 = arith.mulf %17, %18 : vector<8x1xf32>
    %20 = arith.mulf %5, %5 : vector<8x128xf32>
    %cst_12 = arith.constant dense<0.000000e+00> : vector<8xf32>
    %21 = vector.multi_reduction <add>, %20, %cst_12 [1] : vector<8x128xf32> to vector<8xf32>
    %22 = vector.shape_cast %21 : vector<8xf32> to vector<8x1xf32>
    %cst_13 = arith.constant 1.562500e-02 : f32
    %23 = vector.broadcast %cst_13 : f32 to vector<8x1xf32>
    %24 = arith.mulf %22, %23 : vector<8x1xf32>
    %25 = arith.mulf %19, %19 : vector<8x1xf32>
    %26 = arith.subf %24, %25 : vector<8x1xf32>
    %27 = vector.broadcast %19 : vector<8x1xf32> to vector<8x128xf32>
    %28 = arith.subf %5, %27 : vector<8x128xf32>
    %cst_14 = arith.constant 9.99999974E-6 : f32
    %29 = vector.broadcast %cst_14 : f32 to vector<8x1xf32>
    %30 = arith.addf %26, %29 : vector<8x1xf32>
    %31 = math.rsqrt %30 : vector<8x1xf32>
    %32 = vector.broadcast %31 : vector<8x1xf32> to vector<8x128xf32>
    %33 = arith.mulf %28, %32 : vector<8x128xf32>
    %c0_15 = arith.constant 0 : index
    %c0_16 = arith.constant 0 : index
    %34 = vector.load %arg3[%c0_15, %c0_16] : memref<1x128xf32, #tpu.memory_space<vmem>>, vector<1x128xf32>
    %35 = vector.broadcast %34 : vector<1x128xf32> to vector<8x128xf32>
    %36 = arith.mulf %33, %35 : vector<8x128xf32>
    %c0_17 = arith.constant 0 : index
    %c0_18 = arith.constant 0 : index
    %37 = vector.load %arg4[%c0_17, %c0_18] : memref<1x128xf32, #tpu.memory_space<vmem>>, vector<1x128xf32>
    %38 = vector.broadcast %37 : vector<1x128xf32> to vector<8x128xf32>
    %39 = arith.addf %36, %38 : vector<8x128xf32>
    %40 = arith.truncf %39 : vector<8x128xf32> to vector<8x128xbf16>
    %c0_19 = arith.constant 0 : index
    %c0_20 = arith.constant 0 : index
    %41 = vector.load %arg5[%c0_19, %c0_20] : memref<128x128xbf16, #tpu.memory_space<vmem>>, vector<128x128xbf16>
    %cst_21 = arith.constant dense<0.000000e+00> : vector<8x128xf32>
    %42 = tpu.matmul %40, %41, %cst_21 {dimension_numbers = #tpu.dot_dimension_numbers<[1], [0], [0], [1], [0, 0, 1, 1], [], []>} : vector<8x128xbf16>, vector<128x128xbf16>, vector<8x128xf32> -> vector<8x128xf32>
    %c0_22 = arith.constant 0 : index
    %c0_23 = arith.constant 0 : index
    %43 = vector.load %arg6[%c0_22, %c0_23] : memref<1x128xf32, #tpu.memory_space<vmem>>, vector<1x128xf32>
    %44 = vector.broadcast %43 : vector<1x128xf32> to vector<8x128xf32>
    %45 = arith.addf %42, %44 : vector<8x128xf32>
    %46 = arith.negf %45 : vector<8x128xf32>
    %47 = math.exp %46 : vector<8x128xf32>
    %cst_24 = arith.constant 1.000000e+00 : f32
    %48 = vector.broadcast %cst_24 : f32 to vector<8x128xf32>
    %49 = arith.addf %48, %47 : vector<8x128xf32>
    %50 = arith.divf %48, %49 : vector<8x128xf32>
    %51 = arith.mulf %45, %50 : vector<8x128xf32>
    %52 = arith.truncf %51 : vector<8x128xf32> to vector<8x128xbf16>
    %c0_25 = arith.constant 0 : index
    %c0_26 = arith.constant 0 : index
    %53 = vector.load %arg7[%c0_25, %c0_26] : memref<128x128xbf16, #tpu.memory_space<vmem>>, vector<128x128xbf16>
    %cst_27 = arith.constant dense<0.000000e+00> : vector<8x128xf32>
    %54 = tpu.matmul %52, %53, %cst_27 {dimension_numbers = #tpu.dot_dimension_numbers<[1], [0], [0], [1], [0, 0, 1, 1], [], []>} : vector<8x128xbf16>, vector<128x128xbf16>, vector<8x128xf32> -> vector<8x128xf32>
    %c0_28 = arith.constant 0 : index
    %c0_29 = arith.constant 0 : index
    %55 = vector.load %arg8[%c0_28, %c0_29] : memref<1x128xf32, #tpu.memory_space<vmem>>, vector<1x128xf32>
    %56 = vector.broadcast %55 : vector<1x128xf32> to vector<8x128xf32>
    %57 = arith.addf %54, %56 : vector<8x128xf32>
    %c0_30 = arith.constant 0 : index
    %c0_31 = arith.constant 0 : index
    %58 = vector.load %arg16[%c0_30, %c0_31] : memref<1x128xf32, #tpu.memory_space<vmem>>, vector<1x128xf32>
    %cst_32 = arith.constant dense<0.000000e+00> : vector<128xf32>
    %59 = vector.multi_reduction <add>, %57, %cst_32 [0] : vector<8x128xf32> to vector<128xf32>
    %60 = vector.shape_cast %59 : vector<128xf32> to vector<1x128xf32>
    %61 = arith.addf %58, %60 : vector<1x128xf32>
    %c0_33 = arith.constant 0 : index
    %c0_34 = arith.constant 0 : index
    %62 = vector.load %arg16[%c0_33, %c0_34] : memref<1x128xf32, #tpu.memory_space<vmem>>, vector<1x128xf32>
    tpu.vector_store %arg16[%c0_33, %c0_34], %61 {strides = array<i32>} : memref<1x128xf32, #tpu.memory_space<vmem>>, vector<1x128xf32>,
    %c0_i32_35 = arith.constant 0 : i32
    %63 = arith.cmpi eq, %arg1, %c0_i32_35 : i32
    %64 = arith.extui %63 : i1 to i32
    %c0_i32_36 = arith.constant 0 : i32
    %65 = arith.cmpi ne, %64, %c0_i32_36 : i32
    scf.if %65 {
      %c0_37 = arith.constant 0 : index
      %c0_38 = arith.constant 0 : index
      %66 = vector.load %arg17[%c0_37, %c0_38] : memref<1x128xf32, #tpu.memory_space<vmem>>, vector<1x128xf32>
      %67 = tpu.iota {dimensions = array<i32: 1>} : vector<1x128xi32>
      %c64_i32 = arith.constant 64 : i32
      %68 = vector.broadcast %c64_i32 : i32 to vector<1x128xi32>
      %69 = arith.cmpi slt, %67, %68 : vector<1x128xi32>
      %c0_39 = arith.constant 0 : index
      %c0_40 = arith.constant 0 : index
      %70 = vector.load %arg16[%c0_39, %c0_40] : memref<1x128xf32, #tpu.memory_space<vmem>>, vector<1x128xf32>
      %71 = arith.divf %70, %66 : vector<1x128xf32>
      %cst_41 = arith.constant 0.000000e+00 : f32
      %72 = vector.broadcast %cst_41 : f32 to vector<1x128xf32>
      %73 = arith.select %69, %71, %72 : vector<1x128xi1>, vector<1x128xf32>
      %74 = arith.truncf %73 : vector<1x128xf32> to vector<1x128xbf16>
      %c0_42 = arith.constant 0 : index
      %c0_43 = arith.constant 0 : index
      %75 = vector.load %arg9[%c0_42, %c0_43] : memref<128x128xbf16, #tpu.memory_space<vmem>>, vector<128x128xbf16>
      %cst_44 = arith.constant dense<0.000000e+00> : vector<1x128xf32>
      %76 = tpu.matmul %74, %75, %cst_44 {dimension_numbers = #tpu.dot_dimension_numbers<[1], [0], [0], [1], [0, 0, 1, 1], [], []>} : vector<1x128xbf16>, vector<128x128xbf16>, vector<1x128xf32> -> vector<1x128xf32>
      %c0_45 = arith.constant 0 : index
      %c0_46 = arith.constant 0 : index
      %77 = vector.load %arg10[%c0_45, %c0_46] : memref<1x128xf32, #tpu.memory_space<vmem>>, vector<1x128xf32>
      %78 = arith.addf %76, %77 : vector<1x128xf32>
      %cst_47 = arith.constant 0.000000e+00 : f32
      %79 = vector.broadcast %cst_47 : f32 to vector<1x128xf32>
      %80 = arith.maximumf %78, %79 : vector<1x128xf32>
      %81 = arith.truncf %80 : vector<1x128xf32> to vector<1x128xbf16>
      %c0_48 = arith.constant 0 : index
      %c0_49 = arith.constant 0 : index
      %82 = vector.load %arg11[%c0_48, %c0_49] : memref<128x128xbf16, #tpu.memory_space<vmem>>, vector<128x128xbf16>
      %cst_50 = arith.constant dense<0.000000e+00> : vector<1x128xf32>
      %83 = tpu.matmul %81, %82, %cst_50 {dimension_numbers = #tpu.dot_dimension_numbers<[1], [0], [0], [1], [0, 0, 1, 1], [], []>} : vector<1x128xbf16>, vector<128x128xbf16>, vector<1x128xf32> -> vector<1x128xf32>
      %c0_51 = arith.constant 0 : index
      %c0_52 = arith.constant 0 : index
      %84 = vector.load %arg12[%c0_51, %c0_52] : memref<1x128xf32, #tpu.memory_space<vmem>>, vector<1x128xf32>
      %85 = arith.addf %83, %84 : vector<1x128xf32>
      %cst_53 = arith.constant 0.000000e+00 : f32
      %86 = vector.broadcast %cst_53 : f32 to vector<1x128xf32>
      %87 = arith.maximumf %85, %86 : vector<1x128xf32>
      %88 = arith.truncf %87 : vector<1x128xf32> to vector<1x128xbf16>
      %c0_54 = arith.constant 0 : index
      %c0_55 = arith.constant 0 : index
      %89 = vector.load %arg13[%c0_54, %c0_55] : memref<128x128xbf16, #tpu.memory_space<vmem>>, vector<128x128xbf16>
      %cst_56 = arith.constant dense<0.000000e+00> : vector<1x128xf32>
      %90 = tpu.matmul %88, %89, %cst_56 {dimension_numbers = #tpu.dot_dimension_numbers<[1], [0], [0], [1], [0, 0, 1, 1], [], []>} : vector<1x128xbf16>, vector<128x128xbf16>, vector<1x128xf32> -> vector<1x128xf32>
      %c0_57 = arith.constant 0 : index
      %c0_58 = arith.constant 0 : index
      %91 = vector.load %arg14[%c0_57, %c0_58] : memref<1x128xf32, #tpu.memory_space<vmem>>, vector<1x128xf32>
      %92 = arith.addf %90, %91 : vector<1x128xf32>
      %93 = vector.shape_cast %92 : vector<1x128xf32> to vector<1x1x128xf32>
      %c0_59 = arith.constant 0 : index
      %c0_60 = arith.constant 0 : index
      %c0_61 = arith.constant 0 : index
      %94 = vector.load %arg15[%c0_59, %c0_60, %c0_61] : memref<1x1x128xf32, #tpu.memory_space<vmem>>, vector<1x1x128xf32>
      tpu.vector_store %arg15[%c0_59, %c0_60, %c0_61], %93 {strides = array<i32>} : memref<1x1x128xf32, #tpu.memory_space<vmem>>, vector<1x1x128xf32>,
    } else {
    }
    return
  }
  func.func @transform_0(%arg0: i32, %arg1: i32) -> (i32, i32, i32) {
    %c0_i32 = arith.constant 0 : i32
    %c0_i32_0 = arith.constant 0 : i32
    return %arg0, %arg1, %c0_i32 : i32, i32, i32
  }
  func.func @transform_1(%arg0: i32, %arg1: i32) -> (i32, i32) {
    %c0_i32 = arith.constant 0 : i32
    %c0_i32_0 = arith.constant 0 : i32
    %c0_i32_1 = arith.constant 0 : i32
    return %c0_i32, %c0_i32_0 : i32, i32
  }
  func.func @transform_2(%arg0: i32, %arg1: i32) -> (i32, i32) {
    %c0_i32 = arith.constant 0 : i32
    %c0_i32_0 = arith.constant 0 : i32
    %c0_i32_1 = arith.constant 0 : i32
    return %c0_i32, %c0_i32_0 : i32, i32
  }
  func.func @transform_3(%arg0: i32, %arg1: i32) -> (i32, i32) {
    %c0_i32 = arith.constant 0 : i32
    %c0_i32_0 = arith.constant 0 : i32
    %c0_i32_1 = arith.constant 0 : i32
    return %c0_i32, %c0_i32_0 : i32, i32
  }
  func.func @transform_4(%arg0: i32, %arg1: i32) -> (i32, i32) {
    %c0_i32 = arith.constant 0 : i32
    %c0_i32_0 = arith.constant 0 : i32
    %c0_i32_1 = arith.constant 0 : i32
    return %c0_i32, %c0_i32_0 : i32, i32
  }
  func.func @transform_5(%arg0: i32, %arg1: i32) -> (i32, i32) {
    %c0_i32 = arith.constant 0 : i32
    %c0_i32_0 = arith.constant 0 : i32
    %c0_i32_1 = arith.constant 0 : i32
    return %c0_i32, %c0_i32_0 : i32, i32
  }
  func.func @transform_6(%arg0: i32, %arg1: i32) -> (i32, i32) {
    %c0_i32 = arith.constant 0 : i32
    %c0_i32_0 = arith.constant 0 : i32
    %c0_i32_1 = arith.constant 0 : i32
    return %c0_i32, %c0_i32_0 : i32, i32
  }
  func.func @transform_7(%arg0: i32, %arg1: i32) -> (i32, i32) {
    %c0_i32 = arith.constant 0 : i32
    %c0_i32_0 = arith.constant 0 : i32
    %c0_i32_1 = arith.constant 0 : i32
    return %c0_i32, %c0_i32_0 : i32, i32
  }
  func.func @transform_8(%arg0: i32, %arg1: i32) -> (i32, i32) {
    %c0_i32 = arith.constant 0 : i32
    %c0_i32_0 = arith.constant 0 : i32
    %c0_i32_1 = arith.constant 0 : i32
    return %c0_i32, %c0_i32_0 : i32, i32
  }
  func.func @transform_9(%arg0: i32, %arg1: i32) -> (i32, i32) {
    %c0_i32 = arith.constant 0 : i32
    %c0_i32_0 = arith.constant 0 : i32
    %c0_i32_1 = arith.constant 0 : i32
    return %c0_i32, %c0_i32_0 : i32, i32
  }
  func.func @transform_10(%arg0: i32, %arg1: i32) -> (i32, i32) {
    %c0_i32 = arith.constant 0 : i32
    %c0_i32_0 = arith.constant 0 : i32
    %c0_i32_1 = arith.constant 0 : i32
    return %c0_i32, %c0_i32_0 : i32, i32
  }
  func.func @transform_11(%arg0: i32, %arg1: i32) -> (i32, i32) {
    %c0_i32 = arith.constant 0 : i32
    %c0_i32_0 = arith.constant 0 : i32
    %c0_i32_1 = arith.constant 0 : i32
    return %c0_i32, %c0_i32_0 : i32, i32
  }
  func.func @transform_12(%arg0: i32, %arg1: i32) -> (i32, i32) {
    %c0_i32 = arith.constant 0 : i32
    %c0_i32_0 = arith.constant 0 : i32
    %c0_i32_1 = arith.constant 0 : i32
    return %c0_i32, %c0_i32_0 : i32, i32
  }
  func.func @transform_13(%arg0: i32, %arg1: i32) -> (i32, i32, i32) {
    %c0_i32 = arith.constant 0 : i32
    %c0_i32_0 = arith.constant 0 : i32
    %c0_i32_1 = arith.constant 0 : i32
    return %arg0, %c0_i32, %c0_i32_0 : i32, i32, i32
  }
}

</mosaic_0001>

<llo_original>
// kernel: tpu_custom_call.1
$region0: #{tpu_custom_call.1}
  #allocation0 [shape = 'u32[]', space=smem, size = 0x4, offset = 0x4, fixed_abs, tag = 'smem constant byte address 0x4 - core index']
  #allocation1 [shape = 'u32[72,128]{1,0:T(1,128)}', space=vmem, size = 0x9000, scoped, tag = 'internal scratch']
  #allocation2 [shape = 'f32[1,128]{1,0:T(1,128)}', space=vmem, size = 0x200, scoped, tag = 'scratch operand']
  #allocation3 [shape = 'f32[1,128]{1,0:T(1,128)}', space=vmem, size = 0x200, scoped, tag = 'scratch operand']
  %s0 = inlined_call_operand.hbm [shape: bf16[2,8,128], index: 0, kind: input, shape index: {}]
  %s1 = inlined_call_operand.hbm [shape: f32[1,128], index: 1, kind: input, shape index: {}]
  %s2 = inlined_call_operand.vmem [shape: f32[1,128], index: 2, kind: input, shape index: {}]
  %s3 = inlined_call_operand.hbm [shape: bf16[128,128], index: 3, kind: input, shape index: {}]
  %s4 = inlined_call_operand.vmem [shape: f32[1,128], index: 4, kind: input, shape index: {}]
  %s5 = inlined_call_operand.hbm [shape: bf16[128,128], index: 5, kind: input, shape index: {}]
  %s6 = inlined_call_operand.vmem [shape: f32[1,128], index: 6, kind: input, shape index: {}]
  %s7 = inlined_call_operand.hbm [shape: bf16[128,128], index: 7, kind: input, shape index: {}]
  %s8 = inlined_call_operand.vmem [shape: f32[1,128], index: 8, kind: input, shape index: {}]
  %s9 = inlined_call_operand.hbm [shape: bf16[128,128], index: 9, kind: input, shape index: {}]
  %s10 = inlined_call_operand.vmem [shape: f32[1,128], index: 10, kind: input, shape index: {}]
  %s11 = inlined_call_operand.hbm [shape: bf16[128,128], index: 11, kind: input, shape index: {}]
  %s12 = inlined_call_operand.vmem [shape: f32[1,128], index: 12, kind: input, shape index: {}]
  %s13 = inlined_call_operand.hbm [shape: f32[2,1,128], index: 13, kind: output, shape index: {}]
  %s14 = sld [smem:[#allocation0]]
  $region121: #{tpu_custom_call.1} parent=0
    _
  %s16 = ssub.s32 1, %s14
  %s17 = scalar_select 0, %s16, %s14
  $region1: #{tpu_custom_call.1} parent=0
    #allocation4 [shape = 'u8[4096]{0}', space=vmem, size = 0x1000, scoped, tag = 'input window, operand 0']
    #allocation5 [shape = 's32[2]{0}', space=sflag, size = 0x8, scoped, tag = 'scoped memory for tpu_custom_call.1']
    #allocation6 [shape = 's32[2]{0}', space=sflag, size = 0x8, scoped, tag = 'scoped memory for tpu_custom_call.1']
    #allocation7 [shape = 'u8[512]{0}', space=vmem, size = 0x400, scoped, tag = 'input window, operand 1, single buffered']
    #allocation8 [shape = 's32[1]{0}', space=sflag, size = 0x4, scoped, tag = 'scoped memory for tpu_custom_call.1']
    #allocation9 [shape = 'u8[32768]{0}', space=vmem, size = 0x8000, scoped, tag = 'input window, operand 3, single buffered']
    #allocation10 [shape = 'u8[32768]{0}', space=vmem, size = 0x8000, scoped, tag = 'input window, operand 5, single buffered']
    #allocation11 [shape = 's32[1]{0}', space=sflag, size = 0x4, scoped, tag = 'scoped memory for tpu_custom_call.1']
    #allocation12 [shape = 'u8[32768]{0}', space=vmem, size = 0x8000, scoped, tag = 'input window, operand 7, single buffered']
    #allocation13 [shape = 'u8[32768]{0}', space=vmem, size = 0x8000, scoped, tag = 'input window, operand 9, single buffered']
    #allocation14 [shape = 's32[1]{0}', space=sflag, size = 0x4, scoped, tag = 'scoped memory for tpu_custom_call.1']
    #allocation15 [shape = 'u8[32768]{0}', space=vmem, size = 0x8000, scoped, tag = 'input window, operand 11, single buffered']
    #allocation16 [shape = 'u8[1024]{0}', space=vmem, size = 0x400, scoped, tag = 'output window, operand 0']
    %18 = vsyncpa [#allocation5], 0
    %s19 = scalar_lea.sflag [#allocation5], 1
    %20 = vsyncpa %s19, 0
    %21 = vsyncpa [#allocation8], 0
    %22 = vsyncpa [#allocation11], 0
    %23 = vsyncpa [#allocation14], 0
    %24 = vsyncpa [#allocation6], 0
    %s25 = scalar_lea.sflag [#allocation6], 1
    %26 = vsyncpa %s25, 0
    loop: start=0, step=1, limit=4
    $region2: #{tpu_custom_call.1} parent=1 // loop_pre_header
      _
    $region3: #{tpu_custom_call.1} parent=1 // loop_header
      %s28 = sphi 0, %s32
      %p29 = scmp.ge.s32.totalorder %s28, 4
      %s35 = sphi 0, %s47
      %s36 = sphi 0, %s43
      %s37 = sphi 0, %s35
      %s38 = sphi 0, %s36
      %s39 = sphi 0, %s37
      %s40 = sphi 0, %s38
      %s52 = sphi 0, %s54
      %s55 = sphi 0, %s52
      %s56 = sphi 0, %s55
      %s72 = sphi 0, %s56
      %s76 = sphi 0, %s76
      %s78 = sphi 0, %s76
      %s79 = sphi 0, %s78
      %s93 = sphi 0, %s79
      %s97 = sphi 0, %s97
      %s99 = sphi 0, %s97
      %s100 = sphi 0, %s99
      %s114 = sphi 0, %s100
      %s118 = sphi 0, %s118
      %s120 = sphi 0, %s118
      %s121 = sphi 0, %s120
      %s135 = sphi 0, %s121
      %s139 = sphi 0, %s139
      %s141 = sphi 0, %s139
      %s142 = sphi 0, %s141
      %s156 = sphi 0, %s142
      %s160 = sphi 0, %s160
      %s162 = sphi 0, %s160
      %s163 = sphi 0, %s162
      %s177 = sphi 0, %s163
      %s181 = sphi 0, %s181
      %s183 = sphi 0, %s181
      %s184 = sphi 0, %s183
      %s198 = sphi 0, %s184
      %s202 = sphi 0, %s202
      %s204 = sphi 0, %s202
      %s205 = sphi 0, %s204
      %s219 = sphi 0, %s205
      %s223 = sphi 0, %s223
      %s225 = sphi 0, %s223
      %s226 = sphi 0, %s225
      %s240 = sphi 0, %s226
      %s244 = sphi 0, %s244
      %s246 = sphi 0, %s244
      %s247 = sphi 0, %s246
      %s261 = sphi 0, %s247
      %s265 = sphi 0, %s265
      %s267 = sphi 0, %s265
      %s268 = sphi 0, %s267
      %s282 = sphi 0, %s268
      %s286 = sphi 0, %s286
      %s288 = sphi 0, %s286
      %s289 = sphi 0, %s288
      %s303 = sphi 0, %s289
      %s307 = sphi 0, %s307
      %s309 = sphi 0, %s307
      %s310 = sphi 0, %s309
      %s324 = sphi 0, %s310
      %s330 = sphi 0, %s332
      %s333 = sphi 0, %s330
      %s334 = sphi 0, %s333
      %s350 = sphi 0, %s334
    $region4: #{tpu_custom_call.1} parent=1 // loop_header_branch
      %31 = sbr.rel (%p29) target = $region8
    $region5: #{tpu_custom_call.1} parent=1 // loop_body
      %s33 = ssub.s32 %s28, 1
      %s34 = ssub.s32 %s28, 2
      %s41 = sadd.s32 1, %s36
      %p42 = scmp.ge.s32.totalorder %s41, 1
      %s43 = scalar_select %p42, 0, %s41
      %s44 = sadd.s32 1, %s35
      %s45 = scalar_select %p42, %s44, %s35
      %p46 = scmp.ge.s32.totalorder %s45, 2
      %s47 = scalar_select %p46, 0, %s45
      %s48 = ssub.s32 %s35, %s47
      %s49 = ssub.s32 %s36, %s43
      %s50 = sor.u32 %s48, %s49
      %p51 = scmp.eq.s32.totalorder %s50, 0
      %s53 = sadd.s32 %s52, 1
      %s54 = scalar_select %p51, %s52, %s53
      %p57 = pneg %p51
      %p58 = scmp.eq.s32.totalorder %s28, 1
      %p59 = por %p57, %p58
      %p60 = scmp.ne.s32.totalorder %s52, %s55
      %p61 = scmp.eq.s32.totalorder %s28, 0
      %p62 = por %p60, %p61
      %p63 = scmp.ne.s32.totalorder %s52, %s55
      %p64 = scmp.eq.s32.totalorder %s33, 1
      %p65 = por %p63, %p64
      %p66 = scmp.ne.s32.totalorder %s55, %s56
      %p67 = scmp.eq.s32.totalorder %s33, 0
      %p68 = por %p66, %p67
      %p69 = scmp.ne.s32.totalorder %s55, %s56
      %p70 = scmp.eq.s32.totalorder %s34, 1
      %p71 = por %p69, %p70
      %p73 = scmp.ne.s32.totalorder %s56, %s72
      %p74 = scmp.eq.s32.totalorder %s34, 0
      %p75 = por %p73, %p74
      %s77 = sadd.s32 %s76, 1
      %p80 = scmp.eq.s32.totalorder %s28, 1
      %p81 = scmp.ne.s32.totalorder %s76, %s78
      %p82 = scmp.eq.s32.totalorder %s28, 0
      %p83 = por %p81, %p82
      %p84 = scmp.ne.s32.totalorder %s76, %s78
      %p85 = scmp.eq.s32.totalorder %s33, 1
      %p86 = por %p84, %p85
      %p87 = scmp.ne.s32.totalorder %s78, %s79
      %p88 = scmp.eq.s32.totalorder %s33, 0
      %p89 = por %p87, %p88
      %p90 = scmp.ne.s32.totalorder %s78, %s79
      %p91 = scmp.eq.s32.totalorder %s34, 1
      %p92 = por %p90, %p91
      %p94 = scmp.ne.s32.totalorder %s79, %s93
      %p95 = scmp.eq.s32.totalorder %s34, 0
      %p96 = por %p94, %p95
      %s98 = sadd.s32 %s97, 1
      %p101 = scmp.eq.s32.totalorder %s28, 1
      %p102 = scmp.ne.s32.totalorder %s97, %s99
      %p103 = scmp.eq.s32.totalorder %s28, 0
      %p104 = por %p102, %p103
      %p105 = scmp.ne.s32.totalorder %s97, %s99
      %p106 = scmp.eq.s32.totalorder %s33, 1
      %p107 = por %p105, %p106
      %p108 = scmp.ne.s32.totalorder %s99, %s100
      %p109 = scmp.eq.s32.totalorder %s33, 0
      %p110 = por %p108, %p109
      %p111 = scmp.ne.s32.totalorder %s99, %s100
      %p112 = scmp.eq.s32.totalorder %s34, 1
      %p113 = por %p111, %p112
      %p115 = scmp.ne.s32.totalorder %s100, %s114
      %p116 = scmp.eq.s32.totalorder %s34, 0
      %p117 = por %p115, %p116
      %s119 = sadd.s32 %s118, 1
      %p122 = scmp.eq.s32.totalorder %s28, 1
      %p123 = scmp.ne.s32.totalorder %s118, %s120
      %p124 = scmp.eq.s32.totalorder %s28, 0
      %p125 = por %p123, %p124
      %p126 = scmp.ne.s32.totalorder %s118, %s120
      %p127 = scmp.eq.s32.totalorder %s33, 1
      %p128 = por %p126, %p127
      %p129 = scmp.ne.s32.totalorder %s120, %s121
      %p130 = scmp.eq.s32.totalorder %s33, 0
      %p131 = por %p129, %p130
      %p132 = scmp.ne.s32.totalorder %s120, %s121
      %p133 = scmp.eq.s32.totalorder %s34, 1
      %p134 = por %p132, %p133
      %p136 = scmp.ne.s32.totalorder %s121, %s135
      %p137 = scmp.eq.s32.totalorder %s34, 0
      %p138 = por %p136, %p137
      %s140 = sadd.s32 %s139, 1
      %p143 = scmp.eq.s32.totalorder %s28, 1
      %p144 = scmp.ne.s32.totalorder %s139, %s141
      %p145 = scmp.eq.s32.totalorder %s28, 0
      %p146 = por %p144, %p145
      %p147 = scmp.ne.s32.totalorder %s139, %s141
      %p148 = scmp.eq.s32.totalorder %s33, 1
      %p149 = por %p147, %p148
      %p150 = scmp.ne.s32.totalorder %s141, %s142
      %p151 = scmp.eq.s32.totalorder %s33, 0
      %p152 = por %p150, %p151
      %p153 = scmp.ne.s32.totalorder %s141, %s142
      %p154 = scmp.eq.s32.totalorder %s34, 1
      %p155 = por %p153, %p154
      %p157 = scmp.ne.s32.totalorder %s142, %s156
      %p158 = scmp.eq.s32.totalorder %s34, 0
      %p159 = por %p157, %p158
      %s161 = sadd.s32 %s160, 1
      %p164 = scmp.eq.s32.totalorder %s28, 1
      %p165 = scmp.ne.s32.totalorder %s160, %s162
      %p166 = scmp.eq.s32.totalorder %s28, 0
      %p167 = por %p165, %p166
      %p168 = scmp.ne.s32.totalorder %s160, %s162
      %p169 = scmp.eq.s32.totalorder %s33, 1
      %p170 = por %p168, %p169
      %p171 = scmp.ne.s32.totalorder %s162, %s163
      %p172 = scmp.eq.s32.totalorder %s33, 0
      %p173 = por %p171, %p172
      %p174 = scmp.ne.s32.totalorder %s162, %s163
      %p175 = scmp.eq.s32.totalorder %s34, 1
      %p176 = por %p174, %p175
      %p178 = scmp.ne.s32.totalorder %s163, %s177
      %p179 = scmp.eq.s32.totalorder %s34, 0
      %p180 = por %p178, %p179
      %s182 = sadd.s32 %s181, 1
      %p185 = scmp.eq.s32.totalorder %s28, 1
      %p186 = scmp.ne.s32.totalorder %s181, %s183
      %p187 = scmp.eq.s32.totalorder %s28, 0
      %p188 = por %p186, %p187
      %p189 = scmp.ne.s32.totalorder %s181, %s183
      %p190 = scmp.eq.s32.totalorder %s33, 1
      %p191 = por %p189, %p190
      %p192 = scmp.ne.s32.totalorder %s183, %s184
      %p193 = scmp.eq.s32.totalorder %s33, 0
      %p194 = por %p192, %p193
      %p195 = scmp.ne.s32.totalorder %s183, %s184
      %p196 = scmp.eq.s32.totalorder %s34, 1
      %p197 = por %p195, %p196
      %p199 = scmp.ne.s32.totalorder %s184, %s198
      %p200 = scmp.eq.s32.totalorder %s34, 0
      %p201 = por %p199, %p200
      %s203 = sadd.s32 %s202, 1
      %p206 = scmp.eq.s32.totalorder %s28, 1
      %p207 = scmp.ne.s32.totalorder %s202, %s204
      %p208 = scmp.eq.s32.totalorder %s28, 0
      %p209 = por %p207, %p208
      %p210 = scmp.ne.s32.totalorder %s202, %s204
      %p211 = scmp.eq.s32.totalorder %s33, 1
      %p212 = por %p210, %p211
      %p213 = scmp.ne.s32.totalorder %s204, %s205
      %p214 = scmp.eq.s32.totalorder %s33, 0
      %p215 = por %p213, %p214
      %p216 = scmp.ne.s32.totalorder %s204, %s205
      %p217 = scmp.eq.s32.totalorder %s34, 1
      %p218 = por %p216, %p217
      %p220 = scmp.ne.s32.totalorder %s205, %s219
      %p221 = scmp.eq.s32.totalorder %s34, 0
      %p222 = por %p220, %p221
      %s224 = sadd.s32 %s223, 1
      %p227 = scmp.eq.s32.totalorder %s28, 1
      %p228 = scmp.ne.s32.totalorder %s223, %s225
      %p229 = scmp.eq.s32.totalorder %s28, 0
      %p230 = por %p228, %p229
      %p231 = scmp.ne.s32.totalorder %s223, %s225
      %p232 = scmp.eq.s32.totalorder %s33, 1
      %p233 = por %p231, %p232
      %p234 = scmp.ne.s32.totalorder %s225, %s226
      %p235 = scmp.eq.s32.totalorder %s33, 0
      %p236 = por %p234, %p235
      %p237 = scmp.ne.s32.totalorder %s225, %s226
      %p238 = scmp.eq.s32.totalorder %s34, 1
      %p239 = por %p237, %p238
      %p241 = scmp.ne.s32.totalorder %s226, %s240
      %p242 = scmp.eq.s32.totalorder %s34, 0
      %p243 = por %p241, %p242
      %s245 = sadd.s32 %s244, 1
      %p248 = scmp.eq.s32.totalorder %s28, 1
      %p249 = scmp.ne.s32.totalorder %s244, %s246
      %p250 = scmp.eq.s32.totalorder %s28, 0
      %p251 = por %p249, %p250
      %p252 = scmp.ne.s32.totalorder %s244, %s246
      %p253 = scmp.eq.s32.totalorder %s33, 1
      %p254 = por %p252, %p253
      %p255 = scmp.ne.s32.totalorder %s246, %s247
      %p256 = scmp.eq.s32.totalorder %s33, 0
      %p257 = por %p255, %p256
      %p258 = scmp.ne.s32.totalorder %s246, %s247
      %p259 = scmp.eq.s32.totalorder %s34, 1
      %p260 = por %p258, %p259
      %p262 = scmp.ne.s32.totalorder %s247, %s261
      %p263 = scmp.eq.s32.totalorder %s34, 0
      %p264 = por %p262, %p263
      %s266 = sadd.s32 %s265, 1
      %p269 = scmp.eq.s32.totalorder %s28, 1
      %p270 = scmp.ne.s32.totalorder %s265, %s267
      %p271 = scmp.eq.s32.totalorder %s28, 0
      %p272 = por %p270, %p271
      %p273 = scmp.ne.s32.totalorder %s265, %s267
      %p274 = scmp.eq.s32.totalorder %s33, 1
      %p275 = por %p273, %p274
      %p276 = scmp.ne.s32.totalorder %s267, %s268
      %p277 = scmp.eq.s32.totalorder %s33, 0
      %p278 = por %p276, %p277
      %p279 = scmp.ne.s32.totalorder %s267, %s268
      %p280 = scmp.eq.s32.totalorder %s34, 1
      %p281 = por %p279, %p280
      %p283 = scmp.ne.s32.totalorder %s268, %s282
      %p284 = scmp.eq.s32.totalorder %s34, 0
      %p285 = por %p283, %p284
      %s287 = sadd.s32 %s286, 1
      %p290 = scmp.eq.s32.totalorder %s28, 1
      %p291 = scmp.ne.s32.totalorder %s286, %s288
      %p292 = scmp.eq.s32.totalorder %s28, 0
      %p293 = por %p291, %p292
      %p294 = scmp.ne.s32.totalorder %s286, %s288
      %p295 = scmp.eq.s32.totalorder %s33, 1
      %p296 = por %p294, %p295
      %p297 = scmp.ne.s32.totalorder %s288, %s289
      %p298 = scmp.eq.s32.totalorder %s33, 0
      %p299 = por %p297, %p298
      %p300 = scmp.ne.s32.totalorder %s288, %s289
      %p301 = scmp.eq.s32.totalorder %s34, 1
      %p302 = por %p300, %p301
      %p304 = scmp.ne.s32.totalorder %s289, %s303
      %p305 = scmp.eq.s32.totalorder %s34, 0
      %p306 = por %p304, %p305
      %s308 = sadd.s32 %s307, 1
      %p311 = scmp.eq.s32.totalorder %s28, 1
      %p312 = scmp.ne.s32.totalorder %s307, %s309
      %p313 = scmp.eq.s32.totalorder %s28, 0
      %p314 = por %p312, %p313
      %p315 = scmp.ne.s32.totalorder %s307, %s309
      %p316 = scmp.eq.s32.totalorder %s33, 1
      %p317 = por %p315, %p316
      %p318 = scmp.ne.s32.totalorder %s309, %s310
      %p319 = scmp.eq.s32.totalorder %s33, 0
      %p320 = por %p318, %p319
      %p321 = scmp.ne.s32.totalorder %s309, %s310
      %p322 = scmp.eq.s32.totalorder %s34, 1
      %p323 = por %p321, %p322
      %p325 = scmp.ne.s32.totalorder %s310, %s324
      %p326 = scmp.eq.s32.totalorder %s34, 0
      %p327 = por %p325, %p326
      %s328 = ssub.s32 %s35, %s47
      %p329 = scmp.eq.s32.totalorder %s328, 0
      %s331 = sadd.s32 %s330, 1
      %s332 = scalar_select %p329, %s330, %s331
      %p335 = pneg %p329
      %p336 = scmp.eq.s32.totalorder %s28, 1
      %p337 = por %p335, %p336
      %p338 = scmp.ne.s32.totalorder %s330, %s333
      %p339 = scmp.eq.s32.totalorder %s28, 0
      %p340 = por %p338, %p339
      %p341 = scmp.ne.s32.totalorder %s330, %s333
      %p342 = scmp.eq.s32.totalorder %s33, 1
      %p343 = por %p341, %p342
      %p344 = scmp.ne.s32.totalorder %s333, %s334
      %p345 = scmp.eq.s32.totalorder %s33, 0
      %p346 = por %p344, %p345
      %p347 = scmp.ne.s32.totalorder %s333, %s334
      %p348 = scmp.eq.s32.totalorder %s34, 1
      %p349 = por %p347, %p348
      %p351 = scmp.ne.s32.totalorder %s334, %s350
      %p352 = scmp.eq.s32.totalorder %s34, 0
      %p353 = por %p351, %p352
      %p354 = scmp.le.s32.totalorder 1, %s28
      %p355 = scmp.lt.s32.totalorder %s28, 3
      %p356 = pnand %p354, %p355
      %p357 = pneg %p356
      // Predicated region
      $region9: #{tpu_custom_call.1} parent=5 // pred_check
        _
      $region10: #{tpu_custom_call.1} parent=5 // pred_check_branch
        %359 = sbr.rel (%p356) target = $region12
      $region11: #{tpu_custom_call.1} parent=5 // pred_region
        %s360 = ssub.s32 %s28, 1
        // Predicated region
        $region13: #{tpu_custom_call.1} parent=11 // pred_check
          %p361 = pneg %p89
        $region14: #{tpu_custom_call.1} parent=11 // pred_check_branch
          %363 = sbr.rel (%p361) target = $region16
        $region15: #{tpu_custom_call.1} parent=11 // pred_region
          %365 = vsyncadd [#allocation8], 0
          %s367 = sshll.u32 %s1, 4
          %s368 = int_to_ptr.hbm [resolvable:$true] %s367
          %s369 = sshll.u32 [#allocation7], 4
          %s370 = int_to_ptr.vmem [resolvable:$true] %s369
          %372 = dma.hbm_to_vmem [thread:$0]  %s368, 16, %s370, [#allocation8]
        $region16: #{tpu_custom_call.1} parent=11 // pred_fallthru
          _
        // Predicated region
        $region17: #{tpu_custom_call.1} parent=11 // pred_check
          %p373 = pneg %p110
        $region18: #{tpu_custom_call.1} parent=11 // pred_check_branch
          %375 = sbr.rel (%p373) target = $region20
        $region19: #{tpu_custom_call.1} parent=11 // pred_region
          _
        $region20: #{tpu_custom_call.1} parent=11 // pred_fallthru
          _
        // Predicated region
        $region21: #{tpu_custom_call.1} parent=11 // pred_check
          %p376 = pneg %p131
        $region22: #{tpu_custom_call.1} parent=11 // pred_check_branch
          %378 = sbr.rel (%p376) target = $region24
        $region23: #{tpu_custom_call.1} parent=11 // pred_region
          %380 = vsyncadd [#allocation8], 0
          %s381 = sshll.u32 %s3, 4
          %s382 = int_to_ptr.hbm [resolvable:$true] %s381
          %s383 = sshll.u32 [#allocation9], 4
          %s384 = int_to_ptr.vmem [resolvable:$true] %s383
          %389 = dma.hbm_to_vmem [thread:$0]  %s382, 1024, %s384, [#allocation8], 64, 64, 4
        $region24: #{tpu_custom_call.1} parent=11 // pred_fallthru
          _
        // Predicated region
        $region25: #{tpu_custom_call.1} parent=11 // pred_check
          %p390 = pneg %p152
        $region26: #{tpu_custom_call.1} parent=11 // pred_check_branch
          %392 = sbr.rel (%p390) target = $region28
        $region27: #{tpu_custom_call.1} parent=11 // pred_region
          _
        $region28: #{tpu_custom_call.1} parent=11 // pred_fallthru
          _
        // Predicated region
        $region29: #{tpu_custom_call.1} parent=11 // pred_check
          %p393 = pneg %p173
        $region30: #{tpu_custom_call.1} parent=11 // pred_check_branch
          %395 = sbr.rel (%p393) target = $region32
        $region31: #{tpu_custom_call.1} parent=11 // pred_region
          %397 = vsyncadd [#allocation11], 0
          %s398 = sshll.u32 %s5, 4
          %s399 = int_to_ptr.hbm [resolvable:$true] %s398
          %s400 = sshll.u32 [#allocation10], 4
          %s401 = int_to_ptr.vmem [resolvable:$true] %s400
          %406 = dma.hbm_to_vmem [thread:$0]  %s399, 1024, %s401, [#allocation11], 64, 64, 4
        $region32: #{tpu_custom_call.1} parent=11 // pred_fallthru
          _
        // Predicated region
        $region33: #{tpu_custom_call.1} parent=11 // pred_check
          %p407 = pneg %p194
        $region34: #{tpu_custom_call.1} parent=11 // pred_check_branch
          %409 = sbr.rel (%p407) target = $region36
        $region35: #{tpu_custom_call.1} parent=11 // pred_region
          _
        $region36: #{tpu_custom_call.1} parent=11 // pred_fallthru
          _
        // Predicated region
        $region37: #{tpu_custom_call.1} parent=11 // pred_check
          %p410 = pneg %p215
        $region38: #{tpu_custom_call.1} parent=11 // pred_check_branch
          %412 = sbr.rel (%p410) target = $region40
        $region39: #{tpu_custom_call.1} parent=11 // pred_region
          %414 = vsyncadd [#allocation11], 0
          %s415 = sshll.u32 %s7, 4
          %s416 = int_to_ptr.hbm [resolvable:$true] %s415
          %s417 = sshll.u32 [#allocation12], 4
          %s418 = int_to_ptr.vmem [resolvable:$true] %s417
          %423 = dma.hbm_to_vmem [thread:$0]  %s416, 1024, %s418, [#allocation11], 64, 64, 4
        $region40: #{tpu_custom_call.1} parent=11 // pred_fallthru
          _
        // Predicated region
        $region41: #{tpu_custom_call.1} parent=11 // pred_check
          %p424 = pneg %p236
        $region42: #{tpu_custom_call.1} parent=11 // pred_check_branch
          %426 = sbr.rel (%p424) target = $region44
        $region43: #{tpu_custom_call.1} parent=11 // pred_region
          _
        $region44: #{tpu_custom_call.1} parent=11 // pred_fallthru
          _
        // Predicated region
        $region45: #{tpu_custom_call.1} parent=11 // pred_check
          %p427 = pneg %p257
        $region46: #{tpu_custom_call.1} parent=11 // pred_check_branch
          %429 = sbr.rel (%p427) target = $region48
        $region47: #{tpu_custom_call.1} parent=11 // pred_region
          %431 = vsyncadd [#allocation14], 0
          %s432 = sshll.u32 %s9, 4
          %s433 = int_to_ptr.hbm [resolvable:$true] %s432
          %s434 = sshll.u32 [#allocation13], 4
          %s435 = int_to_ptr.vmem [resolvable:$true] %s434
          %440 = dma.hbm_to_vmem [thread:$0]  %s433, 1024, %s435, [#allocation14], 64, 64, 4
        $region48: #{tpu_custom_call.1} parent=11 // pred_fallthru
          _
        // Predicated region
        $region49: #{tpu_custom_call.1} parent=11 // pred_check
          %p441 = pneg %p278
        $region50: #{tpu_custom_call.1} parent=11 // pred_check_branch
          %443 = sbr.rel (%p441) target = $region52
        $region51: #{tpu_custom_call.1} parent=11 // pred_region
          _
        $region52: #{tpu_custom_call.1} parent=11 // pred_fallthru
          _
        // Predicated region
        $region53: #{tpu_custom_call.1} parent=11 // pred_check
          %p444 = pneg %p299
        $region54: #{tpu_custom_call.1} parent=11 // pred_check_branch
          %446 = sbr.rel (%p444) target = $region56
        $region55: #{tpu_custom_call.1} parent=11 // pred_region
          %448 = vsyncadd [#allocation14], 0
          %s449 = sshll.u32 %s11, 4
          %s450 = int_to_ptr.hbm [resolvable:$true] %s449
          %s451 = sshll.u32 [#allocation15], 4
          %s452 = int_to_ptr.vmem [resolvable:$true] %s451
          %457 = dma.hbm_to_vmem [thread:$0]  %s450, 1024, %s452, [#allocation14], 64, 64, 4
        $region56: #{tpu_custom_call.1} parent=11 // pred_fallthru
          _
        // Predicated region
        $region57: #{tpu_custom_call.1} parent=11 // pred_check
          %p458 = pneg %p320
        $region58: #{tpu_custom_call.1} parent=11 // pred_check_branch
          %460 = sbr.rel (%p458) target = $region60
        $region59: #{tpu_custom_call.1} parent=11 // pred_region
          _
        $region60: #{tpu_custom_call.1} parent=11 // pred_fallthru
          _
      $region12: #{tpu_custom_call.1} parent=5 // pred_fallthru
        _
      %p461 = scmp.lt.s32.totalorder %s28, 2
      // Predicated region
      $region61: #{tpu_custom_call.1} parent=5 // pred_check
        %p462 = pneg %p461
      $region62: #{tpu_custom_call.1} parent=5 // pred_check_branch
        %464 = sbr.rel (%p462) target = $region64
      $region63: #{tpu_custom_call.1} parent=5 // pred_region
        // Predicated region
        $region65: #{tpu_custom_call.1} parent=63 // pred_check
          %p465 = pneg %p62
        $region66: #{tpu_custom_call.1} parent=63 // pred_check_branch
          %467 = sbr.rel (%p465) target = $region68
        $region67: #{tpu_custom_call.1} parent=63 // pred_region
          %s468 = sand.u32 %s52, 1
          %s469 = scalar_lea.sflag [#allocation5], %s468
          %s470 = sand.u32 %s52, 1
          %s471 = smul.addr %s470, 4
          %s472 = scalar_lea.vmem [#allocation4], %s471
          %474 = vsyncadd %s469, 0
          %s475 = sadd.s32 %s36, %s35
          %s476 = smul.addr %s475, 4
          %s477 = scalar_lea.hbm %s0, %s476
          %s479 = sshll.u32 %s477, 4
          %s480 = int_to_ptr.hbm [resolvable:$true] %s479
          %s481 = sshll.u32 %s472, 4
          %s482 = int_to_ptr.vmem [resolvable:$true] %s481
          %484 = dma.hbm_to_vmem [thread:$0]  %s480, 64, %s482, %s469
        $region68: #{tpu_custom_call.1} parent=63 // pred_fallthru
          _
      $region64: #{tpu_custom_call.1} parent=5 // pred_fallthru
        _
      %p485 = scmp.le.s32.totalorder 1, %s28
      %p486 = scmp.lt.s32.totalorder %s28, 3
      %p487 = pnand %p485, %p486
      %p488 = pneg %p487
      // Predicated region
      $region69: #{tpu_custom_call.1} parent=5 // pred_check
        _
      $region70: #{tpu_custom_call.1} parent=5 // pred_check_branch
        %490 = sbr.rel (%p487) target = $region72
      $region71: #{tpu_custom_call.1} parent=5 // pred_region
        %s491 = ssub.s32 %s28, 1
        %s492 = sand.u32 %s55, 1
        %s493 = scalar_lea.sflag [#allocation5], %s492
        %s494 = sand.u32 %s55, 1
        %s495 = smul.addr %s494, 4
        %s496 = scalar_lea.vmem [#allocation4], %s495
        // Predicated region
        $region73: #{tpu_custom_call.1} parent=71 // pred_check
          %p497 = pneg %p68
        $region74: #{tpu_custom_call.1} parent=71 // pred_check_branch
          %499 = sbr.rel (%p497) target = $region76
        $region75: #{tpu_custom_call.1} parent=71 // pred_region
          %501 = dma.done %s493, 64
        $region76: #{tpu_custom_call.1} parent=71 // pred_fallthru
          _
        // Predicated region
        $region77: #{tpu_custom_call.1} parent=71 // pred_check
          %p502 = pneg %p89
        $region78: #{tpu_custom_call.1} parent=71 // pred_check_branch
          %504 = sbr.rel (%p502) target = $region80
        $region79: #{tpu_custom_call.1} parent=71 // pred_region
          %506 = dma.done [#allocation8], 16
        $region80: #{tpu_custom_call.1} parent=71 // pred_fallthru
          _
        // Predicated region
        $region81: #{tpu_custom_call.1} parent=71 // pred_check
          %p507 = pneg %p131
        $region82: #{tpu_custom_call.1} parent=71 // pred_check_branch
          %509 = sbr.rel (%p507) target = $region84
        $region83: #{tpu_custom_call.1} parent=71 // pred_region
          %511 = dma.done [#allocation8], 1024
        $region84: #{tpu_custom_call.1} parent=71 // pred_fallthru
          _
        // Predicated region
        $region85: #{tpu_custom_call.1} parent=71 // pred_check
          %p512 = pneg %p173
        $region86: #{tpu_custom_call.1} parent=71 // pred_check_branch
          %514 = sbr.rel (%p512) target = $region88
        $region87: #{tpu_custom_call.1} parent=71 // pred_region
          %516 = dma.done [#allocation11], 1024
        $region88: #{tpu_custom_call.1} parent=71 // pred_fallthru
          _
        // Predicated region
        $region89: #{tpu_custom_call.1} parent=71 // pred_check
          %p517 = pneg %p215
        $region90: #{tpu_custom_call.1} parent=71 // pred_check_branch
          %519 = sbr.rel (%p517) target = $region92
        $region91: #{tpu_custom_call.1} parent=71 // pred_region
          %521 = dma.done [#allocation11], 1024
        $region92: #{tpu_custom_call.1} parent=71 // pred_fallthru
          _
        // Predicated region
        $region93: #{tpu_custom_call.1} parent=71 // pred_check
          %p522 = pneg %p257
        $region94: #{tpu_custom_call.1} parent=71 // pred_check_branch
          %524 = sbr.rel (%p522) target = $region96
        $region95: #{tpu_custom_call.1} parent=71 // pred_region
          %526 = dma.done [#allocation14], 1024
        $region96: #{tpu_custom_call.1} parent=71 // pred_fallthru
          _
        // Predicated region
        $region97: #{tpu_custom_call.1} parent=71 // pred_check
          %p527 = pneg %p299
        $region98: #{tpu_custom_call.1} parent=71 // pred_check_branch
          %529 = sbr.rel (%p527) target = $region100
        $region99: #{tpu_custom_call.1} parent=71 // pred_region
          %531 = dma.done [#allocation14], 1024
        $region100: #{tpu_custom_call.1} parent=71 // pred_fallthru
          _
        %s532 = sand.u32 %s55, 1
        %s533 = scalar_lea.sflag [#allocation5], %s532
        %s534 = sand.u32 %s55, 1
        %s535 = smul.addr %s534, 4
        %s536 = scalar_lea.vmem [#allocation4], %s535
        %p537 = pneg %p68
        %p538 = pneg %p65
        %p539 = pneg %p89
        %p540 = pneg %p86
        %p541 = pneg %p110
        %p542 = pneg %p107
        %p543 = pneg %p131
        %p544 = pneg %p128
        %p545 = pneg %p152
        %p546 = pneg %p149
        %p547 = pneg %p173
        %p548 = pneg %p170
        %p549 = pneg %p194
        %p550 = pneg %p191
        %p551 = pneg %p215
        %p552 = pneg %p212
        %p553 = pneg %p236
        %p554 = pneg %p233
        %p555 = pneg %p257
        %p556 = pneg %p254
        %p557 = pneg %p278
        %p558 = pneg %p275
        %p559 = pneg %p299
        %p560 = pneg %p296
        %p561 = pneg %p320
        %p562 = pneg %p317
        %p563 = pneg %p346
        %p564 = pneg %p343
        %s565 = sand.u32 %s333, 1
        %s566 = scalar_lea.sflag [#allocation6], %s565
        %s567 = sand.u32 %s333, 1
        %s568 = scalar_lea.vmem [#allocation16], %s567
        %p569 = scmp.eq.s32.totalorder %s38, 0
        // Predicated region
        $region101: #{tpu_custom_call.1} parent=71 // pred_check
          %p570 = pneg %p569
        $region102: #{tpu_custom_call.1} parent=71 // pred_check_branch
          %572 = sbr.rel (%p570) target = $region104
        $region103: #{tpu_custom_call.1} parent=71 // pred_region
          %573 = vst [vmem:[#allocation2] sm:$0x1] 0.0
          %574 = vst [vmem:[#allocation3] sm:$0x1] 0.0
        $region104: #{tpu_custom_call.1} parent=71 // pred_fallthru
          _
        %v575 = vld [vmem:[%s496] sm:$0xf]
        %v576 = vunpack.c.l.bf16 %v575
        %vm577 = vcmp.ne.f32.partialorder %v576, 0.0
        %v578 = vsel %vm577, 1.0, 0.0
        %v579 = vld [vmem:[#allocation3] sm:$0x1]
        %v580 = vrot.slane %v578, 4
        %v581 = vadd.f32 %v578, %v580
        %v582 = vrot.slane %v581, 2
        %v583 = vadd.f32 %v581, %v582
        %v584 = vrot.slane %v583, 1
        %v585 = vadd.f32 %v583, %v584
        %v586 = vadd.f32 %v579, %v585
        %587 = vst [vmem:[#allocation3] sm:$0x1] %v586
        %588 = vadd.xlane.f32.xlu0 %v576
        %v589 = vpop.xlane.xlu0 %588
        %v590 = vmul.f32 %v589, 0.015625
        %v591 = vmul.f32 %v576, %v576
        %592 = vadd.xlane.f32.xlu0 %v591
        %v593 = vpop.xlane.xlu0 %592
        %v594 = vmul.f32 %v593, 0.015625
        %v595 = vmul.f32 %v590, %v590
        %v596 = vsub.f32 %v594, %v595
        %v597 = vsub.f32 %v576, %v590
        %v598 = vadd.f32 %v596, 1e-05
        %v599 = vrsqrt.pop %v598
        %v600 = vmul.f32 %v599, %v598
        %v601 = vmul.f32 %v600, %v599
        %v602 = vmul.f32 0.5, %v601
        %v603 = vsub.f32 1.5, %v602
        %v604 = vmul.f32 %v599, %v603
        %vm605 = vweird.f32 %v598
        %vm606 = vweird.f32 %v599
        %vm607 = vmor %vm605, %vm606
        %v608 = vsel %vm607, %v599, %v604
        %v609 = vmul.f32 %v597, %v608
        %v610 = vld [vmem:[#allocation7] sm:$0x1]
        %v612 = vperm.slane %v610, 0
        %v614 = vmul.f32 %v609, %v612
        %v615 = vld [vmem:[%s2] sm:$0x1]
        %v617 = vperm.slane %v615, 0
        %v619 = vadd.f32 %v614, %v617
        %v620 = vpack.c.bf16 %v619, %v619
        %v621 = vld [vmem:[#allocation9] sm:$0xf]
        %v622 = vld [vmem:[#allocation9 + $0x4] sm:$0xf]
        %v623 = vld [vmem:[#allocation9 + $0x8] sm:$0xf]
        %v624 = vld [vmem:[#allocation9 + $0xc] sm:$0xf]
        %v625 = vld [vmem:[#allocation9 + $0x10] sm:$0xf]
        %v626 = vld [vmem:[#allocation9 + $0x14] sm:$0xf]
        %v627 = vld [vmem:[#allocation9 + $0x18] sm:$0xf]
        %v628 = vld [vmem:[#allocation9 + $0x1c] sm:$0xf]
        %v629 = vld [vmem:[#allocation9 + $0x20] sm:$0xf]
        %v630 = vld [vmem:[#allocation9 + $0x24] sm:$0xf]
        %v631 = vld [vmem:[#allocation9 + $0x28] sm:$0xf]
        %v632 = vld [vmem:[#allocation9 + $0x2c] sm:$0xf]
        %v633 = vld [vmem:[#allocation9 + $0x30] sm:$0xf]
        %v634 = vld [vmem:[#allocation9 + $0x34] sm:$0xf]
        %v635 = vld [vmem:[#allocation9 + $0x38] sm:$0xf]
        %v636 = vld [vmem:[#allocation9 + $0x3c] sm:$0xf]
        %v637 = vld [vmem:[%s4] sm:$0x1]
        %v639 = vperm.slane %v637, 0
        %v657 = vunpack.c.l.b16 %v621
        %v658 = vunpack.c.l.b16 %v622
        %v659 = vunpack.c.l.b16 %v623
        %v660 = vunpack.c.l.b16 %v624
        %v661 = vunpack.c.l.b16 %v625
        %v662 = vunpack.c.l.b16 %v626
        %v663 = vunpack.c.l.b16 %v627
        %v664 = vunpack.c.l.b16 %v628
        %v665 = vunpack.c.l.b16 %v629
        %v666 = vunpack.c.l.b16 %v630
        %v667 = vunpack.c.l.b16 %v631
        %v668 = vunpack.c.l.b16 %v632
        %v669 = vunpack.c.l.b16 %v633
        %v670 = vunpack.c.l.b16 %v634
        %v671 = vunpack.c.l.b16 %v635
        %v672 = vunpack.c.l.b16 %v636
        %v673 = vpack.c.b16 %v658, %v657
        %v674 = vpack.c.b16 %v660, %v659
        %v675 = vpack.c.b16 %v662, %v661
        %v676 = vpack.c.b16 %v664, %v663
        %v677 = vpack.c.b16 %v666, %v665
        %v678 = vpack.c.b16 %v668, %v667
        %v679 = vpack.c.b16 %v670, %v669
        %v680 = vpack.c.b16 %v672, %v671
        %689 = vmatpush.bf16.msra.mxu0 %v680
        %690 = vmatpush.bf16.msra.mxu0 %v679
        %691 = vmatpush.bf16.msra.mxu0 %v678
        %692 = vmatpush.bf16.msra.mxu0 %v677
        %693 = vmatpush.bf16.msra.mxu0 %v676
        %694 = vmatpush.bf16.msra.mxu0 %v675
        %695 = vmatpush.bf16.msra.mxu0 %v674
        %696 = vmatpush.bf16.msra.mxu0 %v673
        %697 = vmatmul.bf16.gmra.mxu0 %v620
        %v698 = vpop.f32.mrf.mxu0
        %v699 = vadd.f32 %v639, %v698
        %v700 = vpop.f32.mrf.mxu0
        %701 = vdwg.mxu0
        %v702 = vxor.u32 %v699, 2147483648
        %v703 = vmul.f32 %v702, 1.442695
        %v704 = vpow.pop %v703
        %v705 = vadd.f32 %v704, 1.0
        %v706 = vrcp.pop %v705
        %v707 = vmul.f32 %v705, %v706
        %v708 = vsub.f32 1.0, %v707
        %v709 = vmul.f32 %v706, %v708
        %v710 = vadd.f32 %v706, %v709
        %vm711 = vweird.f32 %v705
        %vm712 = vweird.f32 %v706
        %vm713 = vmor %vm711, %vm712
        %v714 = vsel %vm713, %v706, %v710
        %v715 = vand.u32 2147483647, %v705
        %vm716 = vcmp.eq.f32.partialorder %v715, 8.507059e+37
        %v717 = vand.u32 %v705, 2147483648
        %v718 = vor.u32 1.1754944e-38, %v717
        %v719 = vsel %vm716, %v718, %v714
        %v720 = vmul.f32 1.0, %v719
        %v721 = vmul.f32 %v699, %v720
        %v722 = vpack.c.bf16 %v721, %v721
        %v723 = vld [vmem:[#allocation10] sm:$0xf]
        %v724 = vld [vmem:[#allocation10 + $0x4] sm:$0xf]
        %v725 = vld [vmem:[#allocation10 + $0x8] sm:$0xf]
        %v726 = vld [vmem:[#allocation10 + $0xc] sm:$0xf]
        %v727 = vld [vmem:[#allocation10 + $0x10] sm:$0xf]
        %v728 = vld [vmem:[#allocation10 + $0x14] sm:$0xf]
        %v729 = vld [vmem:[#allocation10 + $0x18] sm:$0xf]
        %v730 = vld [vmem:[#allocation10 + $0x1c] sm:$0xf]
        %v731 = vld [vmem:[#allocation10 + $0x20] sm:$0xf]
        %v732 = vld [vmem:[#allocation10 + $0x24] sm:$0xf]
        %v733 = vld [vmem:[#allocation10 + $0x28] sm:$0xf]
        %v734 = vld [vmem:[#allocation10 + $0x2c] sm:$0xf]
        %v735 = vld [vmem:[#allocation10 + $0x30] sm:$0xf]
        %v736 = vld [vmem:[#allocation10 + $0x34] sm:$0xf]
        %v737 = vld [vmem:[#allocation10 + $0x38] sm:$0xf]
        %v738 = vld [vmem:[#allocation10 + $0x3c] sm:$0xf]
        %v739 = vld [vmem:[%s6] sm:$0x1]
        %v741 = vperm.slane %v739, 0
        %v759 = vunpack.c.l.b16 %v723
        %v760 = vunpack.c.l.b16 %v724
        %v761 = vunpack.c.l.b16 %v725
        %v762 = vunpack.c.l.b16 %v726
        %v763 = vunpack.c.l.b16 %v727
        %v764 = vunpack.c.l.b16 %v728
        %v765 = vunpack.c.l.b16 %v729
        %v766 = vunpack.c.l.b16 %v730
        %v767 = vunpack.c.l.b16 %v731
        %v768 = vunpack.c.l.b16 %v732
        %v769 = vunpack.c.l.b16 %v733
        %v770 = vunpack.c.l.b16 %v734
        %v771 = vunpack.c.l.b16 %v735
        %v772 = vunpack.c.l.b16 %v736
        %v773 = vunpack.c.l.b16 %v737
        %v774 = vunpack.c.l.b16 %v738
        %v775 = vpack.c.b16 %v760, %v759
        %v776 = vpack.c.b16 %v762, %v761
        %v777 = vpack.c.b16 %v764, %v763
        %v778 = vpack.c.b16 %v766, %v765
        %v779 = vpack.c.b16 %v768, %v767
        %v780 = vpack.c.b16 %v770, %v769
        %v781 = vpack.c.b16 %v772, %v771
        %v782 = vpack.c.b16 %v774, %v773
        %791 = vmatpush.bf16.msra.mxu0 %v782
        %792 = vmatpush.bf16.msra.mxu0 %v781
        %793 = vmatpush.bf16.msra.mxu0 %v780
        %794 = vmatpush.bf16.msra.mxu0 %v779
        %795 = vmatpush.bf16.msra.mxu0 %v778
        %796 = vmatpush.bf16.msra.mxu0 %v777
        %797 = vmatpush.bf16.msra.mxu0 %v776
        %798 = vmatpush.bf16.msra.mxu0 %v775
        %799 = vmatmul.bf16.gmra.mxu0 %v722
        %v800 = vpop.f32.mrf.mxu0
        %v801 = vadd.f32 %v741, %v800
        %v802 = vpop.f32.mrf.mxu0
        %803 = vdwg.mxu0
        %v804 = vld [vmem:[#allocation2] sm:$0x1]
        %v805 = vrot.slane %v801, 4
        %v806 = vadd.f32 %v801, %v805
        %v807 = vrot.slane %v806, 2
        %v808 = vadd.f32 %v806, %v807
        %v809 = vrot.slane %v808, 1
        %v810 = vadd.f32 %v808, %v809
        %v811 = vadd.f32 %v804, %v810
        %812 = vst [vmem:[#allocation2] sm:$0x1] %v811
        // Predicated region
        $region105: #{tpu_custom_call.1} parent=71 // pred_check
          %p813 = pneg %p569
        $region106: #{tpu_custom_call.1} parent=71 // pred_check_branch
          %815 = sbr.rel (%p813) target = $region108
        $region107: #{tpu_custom_call.1} parent=71 // pred_region
          %v816 = vld [vmem:[#allocation3] sm:$0x1]
          %v817 = vlaneseq
          %v818 = vand.u32 %v817, 127
          %vm819 = vcmp.lt.s32.totalorder %v818, 64
          %v820 = vld [vmem:[#allocation2] sm:$0x1]
          %v821 = vrcp.pop %v816
          %v822 = vmul.f32 %v816, %v821
          %v823 = vsub.f32 1.0, %v822
          %v824 = vmul.f32 %v821, %v823
          %v825 = vadd.f32 %v821, %v824
          %vm826 = vweird.f32 %v816
          %vm827 = vweird.f32 %v821
          %vm828 = vmor %vm826, %vm827
          %v829 = vsel %vm828, %v821, %v825
          %v830 = vand.u32 2147483647, %v816
          %vm831 = vcmp.eq.f32.partialorder %v830, 8.507059e+37
          %v832 = vand.u32 %v816, 2147483648
          %v833 = vor.u32 1.1754944e-38, %v832
          %v834 = vsel %vm831, %v833, %v829
          %v835 = vmul.f32 %v820, %v834
          %v836 = vsel %vm819, %v835, 0.0
          %v837 = vpack.c.bf16 %v836, %v836
          %v838 = vld [vmem:[#allocation12] sm:$0xf]
          %v839 = vld [vmem:[#allocation12 + $0x4] sm:$0xf]
          %v840 = vld [vmem:[#allocation12 + $0x8] sm:$0xf]
          %v841 = vld [vmem:[#allocation12 + $0xc] sm:$0xf]
          %v842 = vld [vmem:[#allocation12 + $0x10] sm:$0xf]
          %v843 = vld [vmem:[#allocation12 + $0x14] sm:$0xf]
          %v844 = vld [vmem:[#allocation12 + $0x18] sm:$0xf]
          %v845 = vld [vmem:[#allocation12 + $0x1c] sm:$0xf]
          %v846 = vld [vmem:[#allocation12 + $0x20] sm:$0xf]
          %v847 = vld [vmem:[#allocation12 + $0x24] sm:$0xf]
          %v848 = vld [vmem:[#allocation12 + $0x28] sm:$0xf]
          %v849 = vld [vmem:[#allocation12 + $0x2c] sm:$0xf]
          %v850 = vld [vmem:[#allocation12 + $0x30] sm:$0xf]
          %v851 = vld [vmem:[#allocation12 + $0x34] sm:$0xf]
          %v852 = vld [vmem:[#allocation12 + $0x38] sm:$0xf]
          %v853 = vld [vmem:[#allocation12 + $0x3c] sm:$0xf]
          %v854 = vld [vmem:[%s8] sm:$0x1]
          %v871 = vunpack.c.l.b16 %v838
          %v872 = vunpack.c.l.b16 %v839
          %v873 = vunpack.c.l.b16 %v840
          %v874 = vunpack.c.l.b16 %v841
          %v875 = vunpack.c.l.b16 %v842
          %v876 = vunpack.c.l.b16 %v843
          %v877 = vunpack.c.l.b16 %v844
          %v878 = vunpack.c.l.b16 %v845
          %v879 = vunpack.c.l.b16 %v846
          %v880 = vunpack.c.l.b16 %v847
          %v881 = vunpack.c.l.b16 %v848
          %v882 = vunpack.c.l.b16 %v849
          %v883 = vunpack.c.l.b16 %v850
          %v884 = vunpack.c.l.b16 %v851
          %v885 = vunpack.c.l.b16 %v852
          %v886 = vunpack.c.l.b16 %v853
          %v887 = vpack.c.b16 %v872, %v871
          %v888 = vpack.c.b16 %v874, %v873
          %v889 = vpack.c.b16 %v876, %v875
          %v890 = vpack.c.b16 %v878, %v877
          %v891 = vpack.c.b16 %v880, %v879
          %v892 = vpack.c.b16 %v882, %v881
          %v893 = vpack.c.b16 %v884, %v883
          %v894 = vpack.c.b16 %v886, %v885
          %903 = vmatpush.bf16.msra.mxu0 %v894
          %904 = vmatpush.bf16.msra.mxu0 %v893
          %905 = vmatpush.bf16.msra.mxu0 %v892
          %906 = vmatpush.bf16.msra.mxu0 %v891
          %907 = vmatpush.bf16.msra.mxu0 %v890
          %908 = vmatpush.bf16.msra.mxu0 %v889
          %909 = vmatpush.bf16.msra.mxu0 %v888
          %910 = vmatpush.bf16.msra.mxu0 %v887
          %911 = vmatmul.bf16.gmra.mxu0 %v837
          %v912 = vpop.f32.mrf.mxu0
          %v913 = vadd.f32 %v854, %v912
          %v914 = vpop.f32.mrf.mxu0
          %915 = vdwg.mxu0
          %v916 = vmax.f32 %v913, 0.0
          %v917 = vpack.c.bf16 %v916, %v916
          %v918 = vld [vmem:[#allocation13] sm:$0xf]
          %v919 = vld [vmem:[#allocation13 + $0x4] sm:$0xf]
          %v920 = vld [vmem:[#allocation13 + $0x8] sm:$0xf]
          %v921 = vld [vmem:[#allocation13 + $0xc] sm:$0xf]
          %v922 = vld [vmem:[#allocation13 + $0x10] sm:$0xf]
          %v923 = vld [vmem:[#allocation13 + $0x14] sm:$0xf]
          %v924 = vld [vmem:[#allocation13 + $0x18] sm:$0xf]
          %v925 = vld [vmem:[#allocation13 + $0x1c] sm:$0xf]
          %v926 = vld [vmem:[#allocation13 + $0x20] sm:$0xf]
          %v927 = vld [vmem:[#allocation13 + $0x24] sm:$0xf]
          %v928 = vld [vmem:[#allocation13 + $0x28] sm:$0xf]
          %v929 = vld [vmem:[#allocation13 + $0x2c] sm:$0xf]
          %v930 = vld [vmem:[#allocation13 + $0x30] sm:$0xf]
          %v931 = vld [vmem:[#allocation13 + $0x34] sm:$0xf]
          %v932 = vld [vmem:[#allocation13 + $0x38] sm:$0xf]
          %v933 = vld [vmem:[#allocation13 + $0x3c] sm:$0xf]
          %v934 = vld [vmem:[%s10] sm:$0x1]
          %v951 = vunpack.c.l.b16 %v918
          %v952 = vunpack.c.l.b16 %v919
          %v953 = vunpack.c.l.b16 %v920
          %v954 = vunpack.c.l.b16 %v921
          %v955 = vunpack.c.l.b16 %v922
          %v956 = vunpack.c.l.b16 %v923
          %v957 = vunpack.c.l.b16 %v924
          %v958 = vunpack.c.l.b16 %v925
          %v959 = vunpack.c.l.b16 %v926
          %v960 = vunpack.c.l.b16 %v927
          %v961 = vunpack.c.l.b16 %v928
          %v962 = vunpack.c.l.b16 %v929
          %v963 = vunpack.c.l.b16 %v930
          %v964 = vunpack.c.l.b16 %v931
          %v965 = vunpack.c.l.b16 %v932
          %v966 = vunpack.c.l.b16 %v933
          %v967 = vpack.c.b16 %v952, %v951
          %v968 = vpack.c.b16 %v954, %v953
          %v969 = vpack.c.b16 %v956, %v955
          %v970 = vpack.c.b16 %v958, %v957
          %v971 = vpack.c.b16 %v960, %v959
          %v972 = vpack.c.b16 %v962, %v961
          %v973 = vpack.c.b16 %v964, %v963
          %v974 = vpack.c.b16 %v966, %v965
          %983 = vmatpush.bf16.msra.mxu0 %v974
          %984 = vmatpush.bf16.msra.mxu0 %v973
          %985 = vmatpush.bf16.msra.mxu0 %v972
          %986 = vmatpush.bf16.msra.mxu0 %v971
          %987 = vmatpush.bf16.msra.mxu0 %v970
          %988 = vmatpush.bf16.msra.mxu0 %v969
          %989 = vmatpush.bf16.msra.mxu0 %v968
          %990 = vmatpush.bf16.msra.mxu0 %v967
          %991 = vmatmul.bf16.gmra.mxu0 %v917
          %v992 = vpop.f32.mrf.mxu0
          %v993 = vadd.f32 %v934, %v992
          %v994 = vpop.f32.mrf.mxu0
          %995 = vdwg.mxu0
          %v996 = vmax.f32 %v993, 0.0
          %v997 = vpack.c.bf16 %v996, %v996
          %v998 = vld [vmem:[#allocation15] sm:$0xf]
          %v999 = vld [vmem:[#allocation15 + $0x4] sm:$0xf]
          %v1000 = vld [vmem:[#allocation15 + $0x8] sm:$0xf]
          %v1001 = vld [vmem:[#allocation15 + $0xc] sm:$0xf]
          %v1002 = vld [vmem:[#allocation15 + $0x10] sm:$0xf]
          %v1003 = vld [vmem:[#allocation15 + $0x14] sm:$0xf]
          %v1004 = vld [vmem:[#allocation15 + $0x18] sm:$0xf]
          %v1005 = vld [vmem:[#allocation15 + $0x1c] sm:$0xf]
          %v1006 = vld [vmem:[#allocation15 + $0x20] sm:$0xf]
          %v1007 = vld [vmem:[#allocation15 + $0x24] sm:$0xf]
          %v1008 = vld [vmem:[#allocation15 + $0x28] sm:$0xf]
          %v1009 = vld [vmem:[#allocation15 + $0x2c] sm:$0xf]
          %v1010 = vld [vmem:[#allocation15 + $0x30] sm:$0xf]
          %v1011 = vld [vmem:[#allocation15 + $0x34] sm:$0xf]
          %v1012 = vld [vmem:[#allocation15 + $0x38] sm:$0xf]
          %v1013 = vld [vmem:[#allocation15 + $0x3c] sm:$0xf]
          %v1014 = vld [vmem:[%s12] sm:$0x1]
          %v1031 = vunpack.c.l.b16 %v998
          %v1032 = vunpack.c.l.b16 %v999
          %v1033 = vunpack.c.l.b16 %v1000
          %v1034 = vunpack.c.l.b16 %v1001
          %v1035 = vunpack.c.l.b16 %v1002
          %v1036 = vunpack.c.l.b16 %v1003
          %v1037 = vunpack.c.l.b16 %v1004
          %v1038 = vunpack.c.l.b16 %v1005
          %v1039 = vunpack.c.l.b16 %v1006
          %v1040 = vunpack.c.l.b16 %v1007
          %v1041 = vunpack.c.l.b16 %v1008
          %v1042 = vunpack.c.l.b16 %v1009
          %v1043 = vunpack.c.l.b16 %v1010
          %v1044 = vunpack.c.l.b16 %v1011
          %v1045 = vunpack.c.l.b16 %v1012
          %v1046 = vunpack.c.l.b16 %v1013
          %v1047 = vpack.c.b16 %v1032, %v1031
          %v1048 = vpack.c.b16 %v1034, %v1033
          %v1049 = vpack.c.b16 %v1036, %v1035
          %v1050 = vpack.c.b16 %v1038, %v1037
          %v1051 = vpack.c.b16 %v1040, %v1039
          %v1052 = vpack.c.b16 %v1042, %v1041
          %v1053 = vpack.c.b16 %v1044, %v1043
          %v1054 = vpack.c.b16 %v1046, %v1045
          %1063 = vmatpush.bf16.msra.mxu0 %v1054
          %1064 = vmatpush.bf16.msra.mxu0 %v1053
          %1065 = vmatpush.bf16.msra.mxu0 %v1052
          %1066 = vmatpush.bf16.msra.mxu0 %v1051
          %1067 = vmatpush.bf16.msra.mxu0 %v1050
          %1068 = vmatpush.bf16.msra.mxu0 %v1049
          %1069 = vmatpush.bf16.msra.mxu0 %v1048
          %1070 = vmatpush.bf16.msra.mxu0 %v1047
          %1071 = vmatmul.bf16.gmra.mxu0 %v997
          %v1072 = vpop.f32.mrf.mxu0
          %v1073 = vadd.f32 %v1014, %v1072
          %v1074 = vpop.f32.mrf.mxu0
          %1075 = vdwg.mxu0
          %1076 = vst [vmem:[%s568] sm:$0x1] %v1073
        $region108: #{tpu_custom_call.1} parent=71 // pred_fallthru
          _
        %s1077 = sand.u32 %s333, 1
        %s1078 = scalar_lea.sflag [#allocation6], %s1077
        %s1079 = sand.u32 %s333, 1
        %s1080 = scalar_lea.vmem [#allocation16], %s1079
        // Predicated region
        $region109: #{tpu_custom_call.1} parent=71 // pred_check
          %p1081 = pneg %p343
        $region110: #{tpu_custom_call.1} parent=71 // pred_check_branch
          %1083 = sbr.rel (%p1081) target = $region112
        $region111: #{tpu_custom_call.1} parent=71 // pred_region
          %1085 = vsyncadd %s1078, 0
          %s1086 = scalar_lea.hbm %s13, %s37
          %s1088 = sshll.u32 %s1080, 4
          %s1089 = int_to_ptr.vmem [resolvable:$true] %s1088
          %s1090 = sshll.u32 %s1086, 4
          %s1091 = int_to_ptr.hbm [resolvable:$true] %s1090
          %1093 = dma.vmem_to_hbm [thread:$0]  %s1089, 16, %s1091, %s1078
        $region112: #{tpu_custom_call.1} parent=71 // pred_fallthru
          _
      $region72: #{tpu_custom_call.1} parent=5 // pred_fallthru
        _
      %p1094 = scmp.le.s32.totalorder 2, %s28
      // Predicated region
      $region113: #{tpu_custom_call.1} parent=5 // pred_check
        %p1095 = pneg %p1094
      $region114: #{tpu_custom_call.1} parent=5 // pred_check_branch
        %1097 = sbr.rel (%p1095) target = $region116
      $region115: #{tpu_custom_call.1} parent=5 // pred_region
        %s1098 = ssub.s32 %s28, 2
        // Predicated region
        $region117: #{tpu_custom_call.1} parent=115 // pred_check
          %p1099 = pneg %p349
        $region118: #{tpu_custom_call.1} parent=115 // pred_check_branch
          %1101 = sbr.rel (%p1099) target = $region120
        $region119: #{tpu_custom_call.1} parent=115 // pred_region
          %s1102 = sand.u32 %s334, 1
          %s1103 = scalar_lea.sflag [#allocation6], %s1102
          %s1104 = sand.u32 %s334, 1
          %s1105 = scalar_lea.vmem [#allocation16], %s1104
          %1107 = dma.done %s1103, 16
        $region120: #{tpu_custom_call.1} parent=115 // pred_fallthru
          _
      $region116: #{tpu_custom_call.1} parent=5 // pred_fallthru
        _
    $region6: #{tpu_custom_call.1} parent=1 // loop_footer
      %s32 = sadd.s32 1, %s28
    $region7: #{tpu_custom_call.1} parent=1 // loop_footer_branch
      %27 = sbr.rel target = $region3
    $region8: #{tpu_custom_call.1} parent=1 // loop_exit
      _
    %1108 = vsyncpa [#allocation5], 1
    %s1109 = scalar_lea.sflag [#allocation5], 1
    %1110 = vsyncpa %s1109, 1
    %1111 = vsyncpa [#allocation8], 1
    %1112 = vsyncpa [#allocation11], 1
    %1113 = vsyncpa [#allocation14], 1
    %1114 = vsyncpa [#allocation6], 1
    %s1115 = scalar_lea.sflag [#allocation6], 1
    %1116 = vsyncpa %s1115, 1

</llo_original>
